<compile_context>
chip_gen: v7x
topology: tpu7x:2x2x1
jax: 0.10.0
libtpu: 0.0.40
codegen_flags: <defaults>
</compile_context>

<pallas_src>
import functools

import numpy as np
import jax
import jax.numpy as jnp
from jax.experimental import pallas as pl
from jax.experimental.pallas import tpu as pltpu

POOL = 4  # AvgPool2d(4)


def _choose_tiles(B, C, H, W, itemsize, h_tile, batch_block,
                  input_block_budget, traffic_target):
    """Pick (h_tile, n_h, batch_block).

    h_tile divides H and is a multiple of the dtype sublane packing
    (8 for 4-byte, 16 for 2-byte, 32 for 1-byte dtypes) unless it equals H
    (a full-extent block is always legal).  batch_block divides B.

    Goal: >= `traffic_target` bytes of HBM traffic per grid step (amortizes
    the ~0.35us fixed step cost) while the double-buffered input blocks stay
    under `input_block_budget` (x2 in VMEM), which keeps the working set
    comfortably inside v7x's 64 MiB VMEM.
    """
    align = {4: 8, 2: 16, 1: 32}.get(itemsize, 8)
    per_row = 2 * C * W * itemsize                 # org + enh, one image row

    if h_tile is None:
        if 2 * H * per_row <= input_block_budget or H % align != 0:
            # Whole-image rows per block.  (Also the fallback when H is not
            # sublane-aligned: H then has no aligned divisor, so we cannot
            # tile; the VMEM limit below is raised to fit instead.  Truly
            # huge unaligned images would need padding support.)
            h_tile = H
        else:
            h_tile = align                          # always divides H here
            max_rows = input_block_budget // (2 * per_row)
            for cand in range(align, min(H - 1, max_rows) + 1, align):
                if H % cand == 0:
                    h_tile = cand
    assert H % h_tile == 0 and h_tile % POOL == 0, (H, h_tile)
    n_h = H // h_tile

    if batch_block is None:
        per_image = 2 * C * h_tile * W * itemsize
        batch_block = 1
        for cand in range(1, B + 1):
            if B % cand:
                continue
            if 2 * cand * per_image > input_block_budget:
                break
            batch_block = cand
            if cand * per_image >= traffic_target:
                break
    assert B % batch_block == 0, (B, batch_block)
    return h_tile, n_h, batch_block


def _pool_operators(th, W, C):
    """Constants so that  avgpool4(mean_c(x)) == ph @ (sum_c x) @ pw.

    The 1/C channel-mean scale is folded into ph (pooling is linear), removing
    a full (th, W) multiply per tile inside the kernel.  Kept in f32 because
    1/(4*C) is not exactly representable in bf16 for C == 3.
    """
    thp, Wp = th // POOL, W // POOL
    ph = np.zeros((thp, th), np.float32)
    for r in range(thp):
        ph[r, r * POOL:(r + 1) * POOL] = 1.0 / (POOL * C)
    pw = np.zeros((W, Wp), np.float32)
    for c in range(Wp):
        pw[c * POOL:(c + 1) * POOL, c] = 1.0 / POOL
    return jnp.asarray(ph), jnp.asarray(pw)


def _l_spa_kernel(org_ref, enh_ref, ph_ref, pw_ref, out_ref, prev_row_ref,
                  *, nb, multi_h):
    """One (nb images) x (th rows) tile.

    NOTE: correctness of the prev_row carry and the SMEM out_ref accumulation
    relies on the H axis being the innermost, sequentially iterated
    ("arbitrary") grid axis, with the batch axis outer ("parallel"; scratch is
    per-core and is reset at h == 0).  Do not reorder the grid or mark the
    H axis "parallel".
    """
    f32 = jnp.float32
    C = org_ref.shape[1]
    h_idx = pl.program_id(1)
    n_h = pl.num_programs(1)

    if multi_h:
        @pl.when(h_idx == 0)
        def _():
            prev_row_ref[...] = jnp.zeros_like(prev_row_ref)

    ph = ph_ref[...]
    pw = pw_ref[...]

    for i in range(nb):
        # Channel-summed difference; the 1/C mean scale is folded into ph.
        # Upcast per 2-D slab so inputs stay in their native dtype in HBM.
        acc = org_ref[i, 0].astype(f32) - enh_ref[i, 0].astype(f32)
        for c in range(1, C):
            acc = acc + (org_ref[i, c].astype(f32) - enh_ref[i, c].astype(f32))

        # AvgPool2d(4) of the channel-mean difference: p = ph @ acc @ pw.
        p = jnp.dot(jnp.dot(ph, acc, preferred_element_type=f32), pw,
                    preferred_element_type=f32)                    # (thp, Wp)
        thp, Wp = p.shape

        # ---- directional energy ------------------------------------------
        # Everything except the horizontal-interior term is first reduced
        # along sublanes into one (1, Wp) row, so each tile ends with only
        # two cross-lane reductions.
        lane = jax.lax.broadcasted_iota(jnp.int32, (1, Wp), 1)
        edge_w = (lane == 0).astype(f32) + (lane == Wp - 1).astype(f32)

        # Left/right image-boundary columns: sum(p[:,0]^2) + sum(p[:,-1]^2).
        row_acc = jnp.sum(p * p * edge_w, axis=0, keepdims=True)

        # Vertical interior pairs inside this tile (each pair counted twice:
        # once as "up" of the lower row, once as "down" of the upper row).
        if thp > 1:
            dv = p[1:, :] - p[:thp - 1, :]
            row_acc = row_acc + 2.0 * jnp.sum(dv * dv, axis=0, keepdims=True)

        top_row = p[0:1, :]
        bot_row = p[thp - 1:thp, :]
        if multi_h:
            # Pair crossing the tile boundary counts twice; the image-top
            # boundary term (prev_row == 0 at h == 0) counts once.
            d_top = top_row - prev_row_ref[pl.ds(i, 1), :]
            factor = jnp.where(h_idx == 0, f32(1.0), f32(2.0))
            row_acc = row_acc + factor * (d_top * d_top)
            # Bottom image-boundary term only on the last H tile.
            is_last = jnp.where(h_idx == n_h - 1, f32(1.0), f32(0.0))
            row_acc = row_acc + is_last * (bot_row * bot_row)
            # Carry this tile's last pooled row to the next H tile.
            prev_row_ref[pl.ds(i, 1), :] = bot_row
        else:
            # Single H tile: top/bottom rows are the image boundaries.
            row_acc = row_acc + top_row * top_row + bot_row * bot_row

        # Horizontal interior pairs (fully local: there is no W tiling).
        tile_sum = jnp.sum(row_acc)
        if Wp > 1:
            dh = p[:, 1:] - p[:, :Wp - 1]
            tile_sum = tile_sum + 2.0 * jnp.sum(dh * dh)

        if multi_h:
            @pl.when(h_idx == 0)
            def _(i=i, tile_sum=tile_sum):
                out_ref[i, 0] = tile_sum

            @pl.when(h_idx != 0)
            def _(i=i, tile_sum=tile_sum):
                out_ref[i, 0] = out_ref[i, 0] + tile_sum
        else:
            out_ref[i, 0] = tile_sum


def l_spa(org, enhance, *, h_tile=None, batch_block=None,
          input_block_budget=16 * 2**20, traffic_target=4 * 2**20):
    """Pallas TPU implementation of L_spa.forward(org, enhance) -> mean(E)."""
    assert org.shape == enhance.shape and org.dtype == enhance.dtype
    B, C, H, W = org.shape
    assert H % POOL == 0 and W % POOL == 0, "H and W must be divisible by 4"
    Hp, Wp = H // POOL, W // POOL
    itemsize = jnp.dtype(org.dtype).itemsize

    th, n_h, nb = _choose_tiles(B, C, H, W, itemsize, h_tile, batch_block,
                                input_block_budget, traffic_target)
    thp = th // POOL
    ph, pw = _pool_operators(th, W, C)

    kernel = functools.partial(_l_spa_kernel, nb=nb, multi_h=(n_h > 1))

    # VMEM footprint: double-buffered input blocks + double-buffered pooling
    # constants + carry scratch (+ margin for layout padding).
    vmem_needed = (2 * 2 * nb * C * th * W * itemsize
                   + 2 * 4 * (thp * th + W * Wp)
                   + 4 * nb * Wp)
    vmem_limit = int(max(32 << 20, vmem_needed + (8 << 20)))

    partials = pl.pallas_call(
        kernel,
        out_shape=jax.ShapeDtypeStruct((B, 1), jnp.float32),
        grid=(B // nb, n_h),
        in_specs=[
            pl.BlockSpec((nb, C, th, W), lambda b, h: (b, 0, h, 0)),
            pl.BlockSpec((nb, C, th, W), lambda b, h: (b, 0, h, 0)),
            pl.BlockSpec((thp, th), lambda b, h: (0, 0)),
            pl.BlockSpec((W, Wp), lambda b, h: (0, 0)),
        ],
        out_specs=pl.BlockSpec((nb, 1), lambda b, h: (b, 0),
                               memory_space=pltpu.MemorySpace.SMEM),
        scratch_shapes=[pltpu.VMEM((nb, Wp), jnp.float32)],
        compiler_params=pltpu.CompilerParams(
            # Batch axis outer + "parallel" (megacore); H axis innermost +
            # "arbitrary" (sequential: carry + accumulation depend on it).
            dimension_semantics=("parallel", "arbitrary"),
            vmem_limit_bytes=vmem_limit,
        ),
    )(org, enhance, ph, pw)

    return jnp.sum(partials) / float(B * Hp * Wp)


def l_spa_ref(org, enhance):
    """Pure-JAX reference mirroring the PyTorch forward exactly."""
    om = jnp.mean(org.astype(jnp.float32), axis=1, keepdims=True)
    em = jnp.mean(enhance.astype(jnp.float32), axis=1, keepdims=True)

    def pool(x):
        B, _, H, W = x.shape
        return x.reshape(B, 1, H // POOL, POOL, W // POOL, POOL).mean(axis=(3, 5))

    def diffs(x):
        left = x - jnp.pad(x[:, :, :, :-1], ((0, 0), (0, 0), (0, 0), (1, 0)))
        right = x - jnp.pad(x[:, :, :, 1:], ((0, 0), (0, 0), (0, 0), (0, 1)))
        up = x - jnp.pad(x[:, :, :-1, :], ((0, 0), (0, 0), (1, 0), (0, 0)))
        down = x - jnp.pad(x[:, :, 1:, :], ((0, 0), (0, 0), (0, 1), (0, 0)))
        return left, right, up, down

    op, ep = pool(om), pool(em)
    ol, orr, ou, od = diffs(op)
    el, er, eu, ed = diffs(ep)
    E = (ol - el) ** 2 + (orr - er) ** 2 + (ou - eu) ** 2 + (od - ed) ** 2
    return jnp.mean(E)


if __name__ == "__main__":
    key = jax.random.PRNGKey(0)
    k1, k2, k3, k4, k5, k6 = jax.random.split(key, 6)

    # 1) Small f32 case (single-H-tile fast path, nb = 2 batch blocking).
    org = jax.random.uniform(k1, (2, 4, 16, 16), dtype=jnp.float32)
    enh = jax.random.uniform(k2, (2, 4, 16, 16), dtype=jnp.float32)
    out = jax.block_until_ready(l_spa(org, enh))
    ref = l_spa_ref(org, enh)
    assert jnp.allclose(out, ref, rtol=1e-4, atol=1e-5), ("case1", out, ref)

    # 2) Multi-H-tile path (prev_row carry, cross-tile factor-2 term,
    #    bottom-boundary term, SMEM out read-modify-write): force n_h = 4.
    org = jax.random.uniform(k3, (2, 3, 64, 256), dtype=jnp.float32)
    enh = jax.random.uniform(k4, (2, 3, 64, 256), dtype=jnp.float32)
    out = jax.block_until_ready(l_spa(org, enh, h_tile=16, batch_block=1))
    ref = l_spa_ref(org, enh)
    assert jnp.allclose(out, ref, rtol=1e-4, atol=1e-5), ("case2", out, ref)

    # 3) bf16 inputs stay bf16 in HBM (halved traffic); compute is f32 in-kernel.
    org = jax.random.uniform(k5, (2, 3, 32, 128), dtype=jnp.float32).astype(jnp.bfloat16)
    enh = jax.random.uniform(k6, (2, 3, 32, 128), dtype=jnp.float32).astype(jnp.bfloat16)
    out = jax.block_until_ready(l_spa(org, enh))
    ref = l_spa_ref(org, enh)
    assert jnp.allclose(out, ref, rtol=1e-4, atol=1e-5), ("case3", out, ref)

    print("KERNEL_OK")
</pallas_src>

<mosaic_0001>
module attributes {stable_mosaic.version = 11 : i64} {
  func.func @_l_spa_kernel(%arg0: i32, %arg1: i32, %arg2: memref<2x4x16x16xf32, #tpu.memory_space<vmem>>, %arg3: memref<2x4x16x16xf32, #tpu.memory_space<vmem>>, %arg4: memref<4x16xf32, #tpu.memory_space<vmem>>, %arg5: memref<16x4xf32, #tpu.memory_space<vmem>>, %arg6: memref<2x1xf32, #tpu.memory_space<smem>>, %arg7: memref<2x4xf32, #tpu.memory_space<vmem>>) attributes {dimension_semantics = [#tpu.dimension_semantics<parallel>, #tpu.dimension_semantics<arbitrary>], iteration_bounds = array<i64: 1, 1>, scalar_prefetch = 0 : i64, scratch_operands = 1 : i64, tpu.core_type = #tpu.core_type<tc>, window_params = [{transform_indices = @transform_0, window_bounds = array<i64: 2, 4, 16, 16>}, {transform_indices = @transform_1, window_bounds = array<i64: 2, 4, 16, 16>}, {pipeline_mode = #tpu.pipeline_mode<synchronous>, transform_indices = @transform_2, window_bounds = array<i64: 4, 16>}, {pipeline_mode = #tpu.pipeline_mode<synchronous>, transform_indices = @transform_3, window_bounds = array<i64: 16, 4>}, {transform_indices = @transform_4, window_bounds = array<i64: 2, 1>}]} {
    %c0 = arith.constant 0 : index
    %c0_0 = arith.constant 0 : index
    %0 = vector.load %arg4[%c0, %c0_0] : memref<4x16xf32, #tpu.memory_space<vmem>>, vector<4x16xf32>
    %c0_1 = arith.constant 0 : index
    %c0_2 = arith.constant 0 : index
    %1 = vector.load %arg5[%c0_1, %c0_2] : memref<16x4xf32, #tpu.memory_space<vmem>>, vector<16x4xf32>
    %c0_3 = arith.constant 0 : index
    %c0_4 = arith.constant 0 : index
    %c0_5 = arith.constant 0 : index
    %c0_6 = arith.constant 0 : index
    %2 = vector.load %arg2[%c0_3, %c0_4, %c0_5, %c0_6] : memref<2x4x16x16xf32, #tpu.memory_space<vmem>>, vector<1x1x16x16xf32>
    %3 = vector.shape_cast %2 : vector<1x1x16x16xf32> to vector<16x16xf32>
    %c0_7 = arith.constant 0 : index
    %c0_8 = arith.constant 0 : index
    %c0_9 = arith.constant 0 : index
    %c0_10 = arith.constant 0 : index
    %4 = vector.load %arg3[%c0_7, %c0_8, %c0_9, %c0_10] : memref<2x4x16x16xf32, #tpu.memory_space<vmem>>, vector<1x1x16x16xf32>
    %5 = vector.shape_cast %4 : vector<1x1x16x16xf32> to vector<16x16xf32>
    %6 = arith.subf %3, %5 : vector<16x16xf32>
    %c0_11 = arith.constant 0 : index
    %c1 = arith.constant 1 : index
    %c0_12 = arith.constant 0 : index
    %c0_13 = arith.constant 0 : index
    %7 = vector.load %arg2[%c0_11, %c1, %c0_12, %c0_13] : memref<2x4x16x16xf32, #tpu.memory_space<vmem>>, vector<1x1x16x16xf32>
    %8 = vector.shape_cast %7 : vector<1x1x16x16xf32> to vector<16x16xf32>
    %c0_14 = arith.constant 0 : index
    %c1_15 = arith.constant 1 : index
    %c0_16 = arith.constant 0 : index
    %c0_17 = arith.constant 0 : index
    %9 = vector.load %arg3[%c0_14, %c1_15, %c0_16, %c0_17] : memref<2x4x16x16xf32, #tpu.memory_space<vmem>>, vector<1x1x16x16xf32>
    %10 = vector.shape_cast %9 : vector<1x1x16x16xf32> to vector<16x16xf32>
    %11 = arith.subf %8, %10 : vector<16x16xf32>
    %12 = arith.addf %6, %11 : vector<16x16xf32>
    %c0_18 = arith.constant 0 : index
    %c2 = arith.constant 2 : index
    %c0_19 = arith.constant 0 : index
    %c0_20 = arith.constant 0 : index
    %13 = vector.load %arg2[%c0_18, %c2, %c0_19, %c0_20] : memref<2x4x16x16xf32, #tpu.memory_space<vmem>>, vector<1x1x16x16xf32>
    %14 = vector.shape_cast %13 : vector<1x1x16x16xf32> to vector<16x16xf32>
    %c0_21 = arith.constant 0 : index
    %c2_22 = arith.constant 2 : index
    %c0_23 = arith.constant 0 : index
    %c0_24 = arith.constant 0 : index
    %15 = vector.load %arg3[%c0_21, %c2_22, %c0_23, %c0_24] : memref<2x4x16x16xf32, #tpu.memory_space<vmem>>, vector<1x1x16x16xf32>
    %16 = vector.shape_cast %15 : vector<1x1x16x16xf32> to vector<16x16xf32>
    %17 = arith.subf %14, %16 : vector<16x16xf32>
    %18 = arith.addf %12, %17 : vector<16x16xf32>
    %c0_25 = arith.constant 0 : index
    %c3 = arith.constant 3 : index
    %c0_26 = arith.constant 0 : index
    %c0_27 = arith.constant 0 : index
    %19 = vector.load %arg2[%c0_25, %c3, %c0_26, %c0_27] : memref<2x4x16x16xf32, #tpu.memory_space<vmem>>, vector<1x1x16x16xf32>
    %20 = vector.shape_cast %19 : vector<1x1x16x16xf32> to vector<16x16xf32>
    %c0_28 = arith.constant 0 : index
    %c3_29 = arith.constant 3 : index
    %c0_30 = arith.constant 0 : index
    %c0_31 = arith.constant 0 : index
    %21 = vector.load %arg3[%c0_28, %c3_29, %c0_30, %c0_31] : memref<2x4x16x16xf32, #tpu.memory_space<vmem>>, vector<1x1x16x16xf32>
    %22 = vector.shape_cast %21 : vector<1x1x16x16xf32> to vector<16x16xf32>
    %23 = arith.subf %20, %22 : vector<16x16xf32>
    %24 = arith.addf %18, %23 : vector<16x16xf32>
    %cst = arith.constant dense<0.000000e+00> : vector<4x16xf32>
    %25 = tpu.matmul %0, %24, %cst {dimension_numbers = #tpu.dot_dimension_numbers<[1], [0], [0], [1], [0, 0, 1, 1], [], []>} : vector<4x16xf32>, vector<16x16xf32>, vector<4x16xf32> -> vector<4x16xf32>
    %cst_32 = arith.constant dense<0.000000e+00> : vector<4x4xf32>
    %26 = tpu.matmul %25, %1, %cst_32 {dimension_numbers = #tpu.dot_dimension_numbers<[1], [0], [0], [1], [0, 0, 1, 1], [], []>} : vector<4x16xf32>, vector<16x4xf32>, vector<4x4xf32> -> vector<4x4xf32>
    %27 = tpu.iota {dimensions = array<i32: 1>} : vector<1x4xi32>
    %c0_i32 = arith.constant 0 : i32
    %28 = vector.broadcast %c0_i32 : i32 to vector<1x4xi32>
    %29 = arith.cmpi eq, %27, %28 : vector<1x4xi32>
    %30 = arith.extui %29 : vector<1x4xi1> to vector<1x4xi32>
    %31 = arith.sitofp %30 : vector<1x4xi32> to vector<1x4xf32>
    %c3_i32 = arith.constant 3 : i32
    %32 = vector.broadcast %c3_i32 : i32 to vector<1x4xi32>
    %33 = arith.cmpi eq, %27, %32 : vector<1x4xi32>
    %34 = arith.extui %33 : vector<1x4xi1> to vector<1x4xi32>
    %35 = arith.sitofp %34 : vector<1x4xi32> to vector<1x4xf32>
    %36 = arith.addf %31, %35 : vector<1x4xf32>
    %37 = arith.mulf %26, %26 : vector<4x4xf32>
    %38 = vector.broadcast %36 : vector<1x4xf32> to vector<4x4xf32>
    %39 = arith.mulf %37, %38 : vector<4x4xf32>
    %cst_33 = arith.constant dense<0.000000e+00> : vector<4xf32>
    %40 = vector.multi_reduction <add>, %39, %cst_33 [0] : vector<4x4xf32> to vector<4xf32>
    %41 = vector.shape_cast %40 : vector<4xf32> to vector<1x4xf32>
    %42 = vector.extract_strided_slice %26 {offsets = [1, 0], sizes = [3, 4], strides = [1, 1]} : vector<4x4xf32> to vector<3x4xf32>
    %43 = vector.extract_strided_slice %26 {offsets = [0, 0], sizes = [3, 4], strides = [1, 1]} : vector<4x4xf32> to vector<3x4xf32>
    %44 = arith.subf %42, %43 : vector<3x4xf32>
    %45 = arith.mulf %44, %44 : vector<3x4xf32>
    %cst_34 = arith.constant dense<0.000000e+00> : vector<4xf32>
    %46 = vector.multi_reduction <add>, %45, %cst_34 [0] : vector<3x4xf32> to vector<4xf32>
    %47 = vector.shape_cast %46 : vector<4xf32> to vector<1x4xf32>
    %cst_35 = arith.constant 2.000000e+00 : f32
    %48 = vector.broadcast %cst_35 : f32 to vector<1x4xf32>
    %49 = arith.mulf %48, %47 : vector<1x4xf32>
    %50 = arith.addf %41, %49 : vector<1x4xf32>
    %51 = vector.extract_strided_slice %26 {offsets = [0, 0], sizes = [1, 4], strides = [1, 1]} : vector<4x4xf32> to vector<1x4xf32>
    %52 = vector.extract_strided_slice %26 {offsets = [3, 0], sizes = [1, 4], strides = [1, 1]} : vector<4x4xf32> to vector<1x4xf32>
    %53 = arith.mulf %51, %51 : vector<1x4xf32>
    %54 = arith.addf %50, %53 : vector<1x4xf32>
    %55 = arith.mulf %52, %52 : vector<1x4xf32>
    %56 = arith.addf %54, %55 : vector<1x4xf32>
    %57 = vector.shape_cast %56 : vector<1x4xf32> to vector<1x1x4xf32>
    %cst_36 = arith.constant dense<0.000000e+00> : vector<1xf32>
    %58 = vector.multi_reduction <add>, %57, %cst_36 [1, 2] : vector<1x1x4xf32> to vector<1xf32>
    %59 = vector.shape_cast %58 : vector<1xf32> to vector<1x1x1xf32>
    %60 = vector.extract %59[0, 0, 0] : f32 from vector<1x1x1xf32>
    %61 = vector.extract_strided_slice %26 {offsets = [0, 1], sizes = [4, 3], strides = [1, 1]} : vector<4x4xf32> to vector<4x3xf32>
    %62 = vector.extract_strided_slice %26 {offsets = [0, 0], sizes = [4, 3], strides = [1, 1]} : vector<4x4xf32> to vector<4x3xf32>
    %63 = arith.subf %61, %62 : vector<4x3xf32>
    %64 = arith.mulf %63, %63 : vector<4x3xf32>
    %65 = vector.shape_cast %64 : vector<4x3xf32> to vector<1x4x3xf32>
    %cst_37 = arith.constant dense<0.000000e+00> : vector<1xf32>
    %66 = vector.multi_reduction <add>, %65, %cst_37 [1, 2] : vector<1x4x3xf32> to vector<1xf32>
    %67 = vector.shape_cast %66 : vector<1xf32> to vector<1x1x1xf32>
    %68 = vector.extract %67[0, 0, 0] : f32 from vector<1x1x1xf32>
    %cst_38 = arith.constant 2.000000e+00 : f32
    %69 = arith.mulf %cst_38, %68 : f32
    %70 = arith.addf %60, %69 : f32
    %c0_39 = arith.constant 0 : index
    %c0_40 = arith.constant 0 : index
    %71 = memref.load %arg6[%c0_39, %c0_40] : memref<2x1xf32, #tpu.memory_space<smem>>
    memref.store %70, %arg6[%c0_39, %c0_40] : memref<2x1xf32, #tpu.memory_space<smem>>
    %c1_41 = arith.constant 1 : index
    %c0_42 = arith.constant 0 : index
    %c0_43 = arith.constant 0 : index
    %c0_44 = arith.constant 0 : index
    %72 = vector.load %arg2[%c1_41, %c0_42, %c0_43, %c0_44] : memref<2x4x16x16xf32, #tpu.memory_space<vmem>>, vector<1x1x16x16xf32>
    %73 = vector.shape_cast %72 : vector<1x1x16x16xf32> to vector<16x16xf32>
    %c1_45 = arith.constant 1 : index
    %c0_46 = arith.constant 0 : index
    %c0_47 = arith.constant 0 : index
    %c0_48 = arith.constant 0 : index
    %74 = vector.load %arg3[%c1_45, %c0_46, %c0_47, %c0_48] : memref<2x4x16x16xf32, #tpu.memory_space<vmem>>, vector<1x1x16x16xf32>
    %75 = vector.shape_cast %74 : vector<1x1x16x16xf32> to vector<16x16xf32>
    %76 = arith.subf %73, %75 : vector<16x16xf32>
    %c1_49 = arith.constant 1 : index
    %c1_50 = arith.constant 1 : index
    %c0_51 = arith.constant 0 : index
    %c0_52 = arith.constant 0 : index
    %77 = vector.load %arg2[%c1_49, %c1_50, %c0_51, %c0_52] : memref<2x4x16x16xf32, #tpu.memory_space<vmem>>, vector<1x1x16x16xf32>
    %78 = vector.shape_cast %77 : vector<1x1x16x16xf32> to vector<16x16xf32>
    %c1_53 = arith.constant 1 : index
    %c1_54 = arith.constant 1 : index
    %c0_55 = arith.constant 0 : index
    %c0_56 = arith.constant 0 : index
    %79 = vector.load %arg3[%c1_53, %c1_54, %c0_55, %c0_56] : memref<2x4x16x16xf32, #tpu.memory_space<vmem>>, vector<1x1x16x16xf32>
    %80 = vector.shape_cast %79 : vector<1x1x16x16xf32> to vector<16x16xf32>
    %81 = arith.subf %78, %80 : vector<16x16xf32>
    %82 = arith.addf %76, %81 : vector<16x16xf32>
    %c1_57 = arith.constant 1 : index
    %c2_58 = arith.constant 2 : index
    %c0_59 = arith.constant 0 : index
    %c0_60 = arith.constant 0 : index
    %83 = vector.load %arg2[%c1_57, %c2_58, %c0_59, %c0_60] : memref<2x4x16x16xf32, #tpu.memory_space<vmem>>, vector<1x1x16x16xf32>
    %84 = vector.shape_cast %83 : vector<1x1x16x16xf32> to vector<16x16xf32>
    %c1_61 = arith.constant 1 : index
    %c2_62 = arith.constant 2 : index
    %c0_63 = arith.constant 0 : index
    %c0_64 = arith.constant 0 : index
    %85 = vector.load %arg3[%c1_61, %c2_62, %c0_63, %c0_64] : memref<2x4x16x16xf32, #tpu.memory_space<vmem>>, vector<1x1x16x16xf32>
    %86 = vector.shape_cast %85 : vector<1x1x16x16xf32> to vector<16x16xf32>
    %87 = arith.subf %84, %86 : vector<16x16xf32>
    %88 = arith.addf %82, %87 : vector<16x16xf32>
    %c1_65 = arith.constant 1 : index
    %c3_66 = arith.constant 3 : index
    %c0_67 = arith.constant 0 : index
    %c0_68 = arith.constant 0 : index
    %89 = vector.load %arg2[%c1_65, %c3_66, %c0_67, %c0_68] : memref<2x4x16x16xf32, #tpu.memory_space<vmem>>, vector<1x1x16x16xf32>
    %90 = vector.shape_cast %89 : vector<1x1x16x16xf32> to vector<16x16xf32>
    %c1_69 = arith.constant 1 : index
    %c3_70 = arith.constant 3 : index
    %c0_71 = arith.constant 0 : index
    %c0_72 = arith.constant 0 : index
    %91 = vector.load %arg3[%c1_69, %c3_70, %c0_71, %c0_72] : memref<2x4x16x16xf32, #tpu.memory_space<vmem>>, vector<1x1x16x16xf32>
    %92 = vector.shape_cast %91 : vector<1x1x16x16xf32> to vector<16x16xf32>
    %93 = arith.subf %90, %92 : vector<16x16xf32>
    %94 = arith.addf %88, %93 : vector<16x16xf32>
    %cst_73 = arith.constant dense<0.000000e+00> : vector<4x16xf32>
    %95 = tpu.matmul %0, %94, %cst_73 {dimension_numbers = #tpu.dot_dimension_numbers<[1], [0], [0], [1], [0, 0, 1, 1], [], []>} : vector<4x16xf32>, vector<16x16xf32>, vector<4x16xf32> -> vector<4x16xf32>
    %cst_74 = arith.constant dense<0.000000e+00> : vector<4x4xf32>
    %96 = tpu.matmul %95, %1, %cst_74 {dimension_numbers = #tpu.dot_dimension_numbers<[1], [0], [0], [1], [0, 0, 1, 1], [], []>} : vector<4x16xf32>, vector<16x4xf32>, vector<4x4xf32> -> vector<4x4xf32>
    %97 = tpu.iota {dimensions = array<i32: 1>} : vector<1x4xi32>
    %c0_i32_75 = arith.constant 0 : i32
    %98 = vector.broadcast %c0_i32_75 : i32 to vector<1x4xi32>
    %99 = arith.cmpi eq, %97, %98 : vector<1x4xi32>
    %100 = arith.extui %99 : vector<1x4xi1> to vector<1x4xi32>
    %101 = arith.sitofp %100 : vector<1x4xi32> to vector<1x4xf32>
    %c3_i32_76 = arith.constant 3 : i32
    %102 = vector.broadcast %c3_i32_76 : i32 to vector<1x4xi32>
    %103 = arith.cmpi eq, %97, %102 : vector<1x4xi32>
    %104 = arith.extui %103 : vector<1x4xi1> to vector<1x4xi32>
    %105 = arith.sitofp %104 : vector<1x4xi32> to vector<1x4xf32>
    %106 = arith.addf %101, %105 : vector<1x4xf32>
    %107 = arith.mulf %96, %96 : vector<4x4xf32>
    %108 = vector.broadcast %106 : vector<1x4xf32> to vector<4x4xf32>
    %109 = arith.mulf %107, %108 : vector<4x4xf32>
    %cst_77 = arith.constant dense<0.000000e+00> : vector<4xf32>
    %110 = vector.multi_reduction <add>, %109, %cst_77 [0] : vector<4x4xf32> to vector<4xf32>
    %111 = vector.shape_cast %110 : vector<4xf32> to vector<1x4xf32>
    %112 = vector.extract_strided_slice %96 {offsets = [1, 0], sizes = [3, 4], strides = [1, 1]} : vector<4x4xf32> to vector<3x4xf32>
    %113 = vector.extract_strided_slice %96 {offsets = [0, 0], sizes = [3, 4], strides = [1, 1]} : vector<4x4xf32> to vector<3x4xf32>
    %114 = arith.subf %112, %113 : vector<3x4xf32>
    %115 = arith.mulf %114, %114 : vector<3x4xf32>
    %cst_78 = arith.constant dense<0.000000e+00> : vector<4xf32>
    %116 = vector.multi_reduction <add>, %115, %cst_78 [0] : vector<3x4xf32> to vector<4xf32>
    %117 = vector.shape_cast %116 : vector<4xf32> to vector<1x4xf32>
    %cst_79 = arith.constant 2.000000e+00 : f32
    %118 = vector.broadcast %cst_79 : f32 to vector<1x4xf32>
    %119 = arith.mulf %118, %117 : vector<1x4xf32>
    %120 = arith.addf %111, %119 : vector<1x4xf32>
    %121 = vector.extract_strided_slice %96 {offsets = [0, 0], sizes = [1, 4], strides = [1, 1]} : vector<4x4xf32> to vector<1x4xf32>
    %122 = vector.extract_strided_slice %96 {offsets = [3, 0], sizes = [1, 4], strides = [1, 1]} : vector<4x4xf32> to vector<1x4xf32>
    %123 = arith.mulf %121, %121 : vector<1x4xf32>
    %124 = arith.addf %120, %123 : vector<1x4xf32>
    %125 = arith.mulf %122, %122 : vector<1x4xf32>
    %126 = arith.addf %124, %125 : vector<1x4xf32>
    %127 = vector.shape_cast %126 : vector<1x4xf32> to vector<1x1x4xf32>
    %cst_80 = arith.constant dense<0.000000e+00> : vector<1xf32>
    %128 = vector.multi_reduction <add>, %127, %cst_80 [1, 2] : vector<1x1x4xf32> to vector<1xf32>
    %129 = vector.shape_cast %128 : vector<1xf32> to vector<1x1x1xf32>
    %130 = vector.extract %129[0, 0, 0] : f32 from vector<1x1x1xf32>
    %131 = vector.extract_strided_slice %96 {offsets = [0, 1], sizes = [4, 3], strides = [1, 1]} : vector<4x4xf32> to vector<4x3xf32>
    %132 = vector.extract_strided_slice %96 {offsets = [0, 0], sizes = [4, 3], strides = [1, 1]} : vector<4x4xf32> to vector<4x3xf32>
    %133 = arith.subf %131, %132 : vector<4x3xf32>
    %134 = arith.mulf %133, %133 : vector<4x3xf32>
    %135 = vector.shape_cast %134 : vector<4x3xf32> to vector<1x4x3xf32>
    %cst_81 = arith.constant dense<0.000000e+00> : vector<1xf32>
    %136 = vector.multi_reduction <add>, %135, %cst_81 [1, 2] : vector<1x4x3xf32> to vector<1xf32>
    %137 = vector.shape_cast %136 : vector<1xf32> to vector<1x1x1xf32>
    %138 = vector.extract %137[0, 0, 0] : f32 from vector<1x1x1xf32>
    %cst_82 = arith.constant 2.000000e+00 : f32
    %139 = arith.mulf %cst_82, %138 : f32
    %140 = arith.addf %130, %139 : f32
    %c1_83 = arith.constant 1 : index
    %c0_84 = arith.constant 0 : index
    %141 = memref.load %arg6[%c1_83, %c0_84] : memref<2x1xf32, #tpu.memory_space<smem>>
    memref.store %140, %arg6[%c1_83, %c0_84] : memref<2x1xf32, #tpu.memory_space<smem>>
    return
  }
  func.func @transform_0(%arg0: i32, %arg1: i32) -> (i32, i32, i32, i32) {
    %c0_i32 = arith.constant 0 : i32
    %c0_i32_0 = arith.constant 0 : i32
    %c0_i32_1 = arith.constant 0 : i32
    return %arg0, %c0_i32, %arg1, %c0_i32_0 : i32, i32, i32, i32
  }
  func.func @transform_1(%arg0: i32, %arg1: i32) -> (i32, i32, i32, i32) {
    %c0_i32 = arith.constant 0 : i32
    %c0_i32_0 = arith.constant 0 : i32
    %c0_i32_1 = arith.constant 0 : i32
    return %arg0, %c0_i32, %arg1, %c0_i32_0 : i32, i32, i32, i32
  }
  func.func @transform_2(%arg0: i32, %arg1: i32) -> (i32, i32) {
    %c0_i32 = arith.constant 0 : i32
    %c0_i32_0 = arith.constant 0 : i32
    %c0_i32_1 = arith.constant 0 : i32
    return %c0_i32, %c0_i32_0 : i32, i32
  }
  func.func @transform_3(%arg0: i32, %arg1: i32) -> (i32, i32) {
    %c0_i32 = arith.constant 0 : i32
    %c0_i32_0 = arith.constant 0 : i32
    %c0_i32_1 = arith.constant 0 : i32
    return %c0_i32, %c0_i32_0 : i32, i32
  }
  func.func @transform_4(%arg0: i32, %arg1: i32) -> (i32, i32) {
    %c0_i32 = arith.constant 0 : i32
    %c0_i32_0 = arith.constant 0 : i32
    return %arg0, %c0_i32 : i32, i32
  }
}

</mosaic_0001>

<llo_original>
// kernel: tpu_custom_call.1
$region0: #{tpu_custom_call.1}
  #allocation0 [shape = 'u32[]', space=smem, size = 0x4, offset = 0x4, fixed_abs, tag = 'smem constant byte address 0x4 - core index']
  #allocation1 [shape = 'u32[144,128]{1,0:T(1,128)}', space=vmem, size = 0x12000, scoped, tag = 'internal scratch']
  #allocation2 [shape = 'f32[2,4]{1,0:T(2,128)}', space=vmem, size = 0x400, scoped, tag = 'scratch operand']
  %s0 = inlined_call_operand.hbm [shape: f32[2,4,16,16], index: 0, kind: input, shape index: {}]
  %s1 = inlined_call_operand.hbm [shape: f32[2,4,16,16], index: 1, kind: input, shape index: {}]
  %s2 = inlined_call_operand.vmem [shape: f32[4,16], index: 2, kind: input, shape index: {}]
  %s3 = inlined_call_operand.vmem [shape: f32[16,4], index: 3, kind: input, shape index: {}]
  %s4 = inlined_call_operand.vmem [shape: f32[2,1], index: 4, kind: output, shape index: {}]
  %s5 = sld [smem:[#allocation0]]
  $region34: #{tpu_custom_call.1} parent=0
    _
  %s7 = ssub.s32 1, %s5
  %s8 = scalar_select 0, %s7, %s5
  $region1: #{tpu_custom_call.1} parent=0
    #allocation3 [shape = 'u8[65536]{0}', space=vmem, size = 0x10000, scoped, tag = 'input window, operand 0, single buffered']
    #allocation4 [shape = 's32[1]{0}', space=sflag, size = 0x4, scoped, tag = 'scoped memory for tpu_custom_call.1']
    #allocation5 [shape = 's32[1]{0}', space=sflag, size = 0x4, scoped, tag = 'scoped memory for tpu_custom_call.1']
    #allocation6 [shape = 'u8[65536]{0}', space=vmem, size = 0x10000, scoped, tag = 'input window, operand 1, single buffered']
    #allocation7 [shape = 's32[1]{0}', space=sflag, size = 0x4, scoped, tag = 'scoped memory for tpu_custom_call.1']
    #allocation8 [shape = 'u8[1024]{0}', space=smem, size = 0x400, scoped, tag = 'output window, operand 0, single buffered']
    %9 = vsyncpa [#allocation4], 0
    %10 = vsyncpa [#allocation7], 0
    %11 = vsyncpa [#allocation5], 0
    // Predicated region
    $region2: #{tpu_custom_call.1} parent=1 // pred_check
      _
    $region3: #{tpu_custom_call.1} parent=1 // pred_check_branch
      %13 = sbr.rel (0) target = $region5
    $region4: #{tpu_custom_call.1} parent=1 // pred_region
      %s15 = ssub.s32 2048, 2048
      %16 = vsyncadd [#allocation4], %s15
      %s17 = sshll.u32 [#allocation3], 4
      %s18 = int_to_ptr.vmem [resolvable:$true] %s17
      %23 = dma.hbm_to_vmem [thread:$0]  %s0, 2048, %s18, [#allocation4], 128, 128, 8
    $region5: #{tpu_custom_call.1} parent=1 // pred_fallthru
      _
    // Predicated region
    $region6: #{tpu_custom_call.1} parent=1 // pred_check
      _
    $region7: #{tpu_custom_call.1} parent=1 // pred_check_branch
      %25 = sbr.rel (0) target = $region9
    $region8: #{tpu_custom_call.1} parent=1 // pred_region
      %s27 = ssub.s32 2048, 2048
      %28 = vsyncadd [#allocation7], %s27
      %s29 = sshll.u32 [#allocation6], 4
      %s30 = int_to_ptr.vmem [resolvable:$true] %s29
      %35 = dma.hbm_to_vmem [thread:$0]  %s1, 2048, %s30, [#allocation7], 128, 128, 8
    $region9: #{tpu_custom_call.1} parent=1 // pred_fallthru
      _
    // Predicated region
    $region10: #{tpu_custom_call.1} parent=1 // pred_check
      _
    $region11: #{tpu_custom_call.1} parent=1 // pred_check_branch
      %37 = sbr.rel (0) target = $region13
    $region12: #{tpu_custom_call.1} parent=1 // pred_region
      _
    $region13: #{tpu_custom_call.1} parent=1 // pred_fallthru
      _
    // Predicated region
    $region14: #{tpu_custom_call.1} parent=1 // pred_check
      _
    $region15: #{tpu_custom_call.1} parent=1 // pred_check_branch
      %39 = sbr.rel (0) target = $region17
    $region16: #{tpu_custom_call.1} parent=1 // pred_region
      _
    $region17: #{tpu_custom_call.1} parent=1 // pred_fallthru
      _
    // Predicated region
    $region18: #{tpu_custom_call.1} parent=1 // pred_check
      _
    $region19: #{tpu_custom_call.1} parent=1 // pred_check_branch
      %41 = sbr.rel (0) target = $region21
    $region20: #{tpu_custom_call.1} parent=1 // pred_region
      %42 = dma.done [#allocation4], 2048
    $region21: #{tpu_custom_call.1} parent=1 // pred_fallthru
      _
    // Predicated region
    $region22: #{tpu_custom_call.1} parent=1 // pred_check
      _
    $region23: #{tpu_custom_call.1} parent=1 // pred_check_branch
      %44 = sbr.rel (0) target = $region25
    $region24: #{tpu_custom_call.1} parent=1 // pred_region
      %45 = dma.done [#allocation7], 2048
    $region25: #{tpu_custom_call.1} parent=1 // pred_fallthru
      _
    %v46 = vld [vmem:[%s2] sm:$0xf]
    %v47 = vld [vmem:[%s3] sm:$0xff]
    %v48 = vld [vmem:[%s3 + $0x8] sm:$0xff]
    %v49 = vld [vmem:[#allocation3] sm:$0xff]
    %v50 = vld [vmem:[#allocation3 + $0x8] sm:$0xff]
    %v51 = vld [vmem:[#allocation6] sm:$0xff]
    %v52 = vld [vmem:[#allocation6 + $0x8] sm:$0xff]
    %v53 = vsub.f32 %v49, %v51
    %v54 = vsub.f32 %v50, %v52
    %s55 = scalar_lea.vmem [#allocation3], 16
    %v56 = vld [vmem:[%s55] sm:$0xff]
    %v57 = vld [vmem:[%s55 + $0x8] sm:$0xff]
    %s58 = scalar_lea.vmem [#allocation6], 16
    %v59 = vld [vmem:[%s58] sm:$0xff]
    %v60 = vld [vmem:[%s58 + $0x8] sm:$0xff]
    %v61 = vsub.f32 %v56, %v59
    %v62 = vsub.f32 %v57, %v60
    %v63 = vadd.f32 %v53, %v61
    %v64 = vadd.f32 %v54, %v62
    %s65 = scalar_lea.vmem [#allocation3], 32
    %v66 = vld [vmem:[%s65] sm:$0xff]
    %v67 = vld [vmem:[%s65 + $0x8] sm:$0xff]
    %s68 = scalar_lea.vmem [#allocation6], 32
    %v69 = vld [vmem:[%s68] sm:$0xff]
    %v70 = vld [vmem:[%s68 + $0x8] sm:$0xff]
    %v71 = vsub.f32 %v66, %v69
    %v72 = vsub.f32 %v67, %v70
    %v73 = vadd.f32 %v63, %v71
    %v74 = vadd.f32 %v64, %v72
    %s75 = scalar_lea.vmem [#allocation3], 48
    %v76 = vld [vmem:[%s75] sm:$0xff]
    %v77 = vld [vmem:[%s75 + $0x8] sm:$0xff]
    %s78 = scalar_lea.vmem [#allocation6], 48
    %v79 = vld [vmem:[%s78] sm:$0xff]
    %v80 = vld [vmem:[%s78 + $0x8] sm:$0xff]
    %v81 = vsub.f32 %v76, %v79
    %v82 = vsub.f32 %v77, %v80
    %v83 = vadd.f32 %v73, %v81
    %v84 = vadd.f32 %v74, %v82
    %vm85 = vcmask 130048
    %v87 = vsel %vm85, %v46, 0
    %89 = vmatprep.subr.mxu0 0.0
    %90 = vmatpush1.msra.mxu0 %v83
    %91 = vmatprep.subr.mxu0 0.0
    %92 = vmatpush1.msra.mxu0 %v84
    %93 = vmatprep.subr.mxu0 0.0
    %94 = vmatpush1.msra.mxu0 0.0
    %95 = vmatprep.subr.mxu0 0.0
    %96 = vmatpush1.msra.mxu0 0.0
    %97 = vmatprep.subr.mxu0 0.0
    %98 = vmatpush1.msra.mxu0 0.0
    %99 = vmatprep.subr.mxu0 0.0
    %100 = vmatpush1.msra.mxu0 0.0
    %101 = vmatprep.subr.mxu0 0.0
    %102 = vmatpush1.msra.mxu0 0.0
    %103 = vmatprep.subr.mxu0 0.0
    %104 = vmatpush1.msra.mxu0 0.0
    %105 = vmatprep.subr.mxu0 0.0
    %106 = vmatpush1.msra.mxu0 0.0
    %107 = vmatprep.subr.mxu0 0.0
    %108 = vmatpush1.msra.mxu0 0.0
    %109 = vmatprep.subr.mxu0 0.0
    %110 = vmatpush1.msra.mxu0 0.0
    %111 = vmatprep.subr.mxu0 0.0
    %112 = vmatpush1.msra.mxu0 0.0
    %113 = vmatprep.subr.mxu0 0.0
    %114 = vmatpush1.msra.mxu0 0.0
    %115 = vmatprep.subr.mxu0 0.0
    %116 = vmatpush1.msra.mxu0 0.0
    %117 = vmatprep.subr.mxu0 0.0
    %118 = vmatpush1.msra.mxu0 0.0
    %119 = vmatprep.subr.mxu0 0.0
    %120 = vmatpush1.msra.mxu0 0.0
    %121 = vmatprep.subr.mxu0 0.0
    %122 = vmatpush1.msra.mxu0 0.0
    %123 = vmatprep.subr.mxu0 0.0
    %124 = vmatpush1.msra.mxu0 0.0
    %125 = vmatprep.subr.mxu0 0.0
    %126 = vmatpush1.msra.mxu0 0.0
    %127 = vmatprep.subr.mxu0 0.0
    %128 = vmatpush1.msra.mxu0 0.0
    %129 = vmatprep.subr.mxu0 0.0
    %130 = vmatpush1.msra.mxu0 0.0
    %131 = vmatprep.subr.mxu0 0.0
    %132 = vmatpush1.msra.mxu0 0.0
    %133 = vmatprep.subr.mxu0 0.0
    %134 = vmatpush1.msra.mxu0 0.0
    %135 = vmatprep.subr.mxu0 0.0
    %136 = vmatpush1.msra.mxu0 0.0
    %137 = vmatprep.subr.mxu0 0.0
    %138 = vmatpush1.msra.mxu0 0.0
    %139 = vmatprep.subr.mxu0 0.0
    %140 = vmatpush1.msra.mxu0 0.0
    %141 = vmatprep.subr.mxu0 0.0
    %142 = vmatpush1.msra.mxu0 0.0
    %143 = vmatprep.subr.mxu0 0.0
    %144 = vmatpush1.msra.mxu0 0.0
    %145 = vmatprep.subr.mxu0 0.0
    %146 = vmatpush1.msra.mxu0 0.0
    %147 = vmatprep.subr.mxu0 0.0
    %148 = vmatpush1.msra.mxu0 0.0
    %149 = vmatprep.subr.mxu0 0.0
    %150 = vmatpush1.msra.mxu0 0.0
    %151 = vmatprep.subr.mxu0 0.0
    %152 = vmatpush1.msra.mxu0 0.0
    %153 = vmatprep.mubr.f32.mxu0 0.0
    %154 = vmatmul.mubr.f32.gmra.mrb[0].mxu0 %v87
    %v155 = vpop.f32.mrb[0].mxu0
    %v156 = vadd.f32 0.0, %v155
    %v157 = vpop.f32.mrb[0].mxu0
    %158 = vdwg.mxu0
    %v160 = vsel %vm85, %v156, 0
    %162 = vmatprep.subr.mxu0 0.0
    %163 = vmatpush1.msra.mxu0 %v47
    %164 = vmatprep.subr.mxu0 0.0
    %165 = vmatpush1.msra.mxu0 %v48
    %166 = vmatprep.subr.mxu0 0.0
    %167 = vmatpush1.msra.mxu0 0.0
    %168 = vmatprep.subr.mxu0 0.0
    %169 = vmatpush1.msra.mxu0 0.0
    %170 = vmatprep.subr.mxu0 0.0
    %171 = vmatpush1.msra.mxu0 0.0
    %172 = vmatprep.subr.mxu0 0.0
    %173 = vmatpush1.msra.mxu0 0.0
    %174 = vmatprep.subr.mxu0 0.0
    %175 = vmatpush1.msra.mxu0 0.0
    %176 = vmatprep.subr.mxu0 0.0
    %177 = vmatpush1.msra.mxu0 0.0
    %178 = vmatprep.subr.mxu0 0.0
    %179 = vmatpush1.msra.mxu0 0.0
    %180 = vmatprep.subr.mxu0 0.0
    %181 = vmatpush1.msra.mxu0 0.0
    %182 = vmatprep.subr.mxu0 0.0
    %183 = vmatpush1.msra.mxu0 0.0
    %184 = vmatprep.subr.mxu0 0.0
    %185 = vmatpush1.msra.mxu0 0.0
    %186 = vmatprep.subr.mxu0 0.0
    %187 = vmatpush1.msra.mxu0 0.0
    %188 = vmatprep.subr.mxu0 0.0
    %189 = vmatpush1.msra.mxu0 0.0
    %190 = vmatprep.subr.mxu0 0.0
    %191 = vmatpush1.msra.mxu0 0.0
    %192 = vmatprep.subr.mxu0 0.0
    %193 = vmatpush1.msra.mxu0 0.0
    %194 = vmatprep.subr.mxu0 0.0
    %195 = vmatpush1.msra.mxu0 0.0
    %196 = vmatprep.subr.mxu0 0.0
    %197 = vmatpush1.msra.mxu0 0.0
    %198 = vmatprep.subr.mxu0 0.0
    %199 = vmatpush1.msra.mxu0 0.0
    %200 = vmatprep.subr.mxu0 0.0
    %201 = vmatpush1.msra.mxu0 0.0
    %202 = vmatprep.subr.mxu0 0.0
    %203 = vmatpush1.msra.mxu0 0.0
    %204 = vmatprep.subr.mxu0 0.0
    %205 = vmatpush1.msra.mxu0 0.0
    %206 = vmatprep.subr.mxu0 0.0
    %207 = vmatpush1.msra.mxu0 0.0
    %208 = vmatprep.subr.mxu0 0.0
    %209 = vmatpush1.msra.mxu0 0.0
    %210 = vmatprep.subr.mxu0 0.0
    %211 = vmatpush1.msra.mxu0 0.0
    %212 = vmatprep.subr.mxu0 0.0
    %213 = vmatpush1.msra.mxu0 0.0
    %214 = vmatprep.subr.mxu0 0.0
    %215 = vmatpush1.msra.mxu0 0.0
    %216 = vmatprep.subr.mxu0 0.0
    %217 = vmatpush1.msra.mxu0 0.0
    %218 = vmatprep.subr.mxu0 0.0
    %219 = vmatpush1.msra.mxu0 0.0
    %220 = vmatprep.subr.mxu0 0.0
    %221 = vmatpush1.msra.mxu0 0.0
    %222 = vmatprep.subr.mxu0 0.0
    %223 = vmatpush1.msra.mxu0 0.0
    %224 = vmatprep.subr.mxu0 0.0
    %225 = vmatpush1.msra.mxu0 0.0
    %226 = vmatprep.mubr.f32.mxu0 0.0
    %227 = vmatmul.mubr.f32.gmra.mrb[0].mxu0 %v160
    %v228 = vpop.f32.mrb[0].mxu0
    %v229 = vadd.f32 0.0, %v228
    %v230 = vpop.f32.mrb[0].mxu0
    %231 = vdwg.mxu0
    %v232 = vlaneseq
    %v233 = vand.u32 %v232, 127
    %vm234 = vcmp.eq.s32.totalorder %v233, 0
    %v235 = vsel %vm234, 1, 0
    %v236 = vcvt.s32.f32 %v235
    %vm237 = vcmp.eq.s32.totalorder %v233, 3
    %v238 = vsel %vm237, 1, 0
    %v239 = vcvt.s32.f32 %v238
    %v240 = vadd.f32 %v236, %v239
    %v241 = vmul.f32 %v229, %v229
    %v242 = vmul.f32 %v241, %v240
    %vm243 = vcmask 27648
    %v244 = vsel %vm243, %v242, 0.0
    %v245 = vrot.slane %v244, 4
    %v246 = vadd.f32 %v244, %v245
    %v247 = vrot.slane %v246, 2
    %v248 = vadd.f32 %v246, %v247
    %v249 = vrot.slane %v248, 1
    %v250 = vadd.f32 %v248, %v249
    %v252 = vrot.slane %v229, 7
    %v254 = vsub.f32 %v229, %v252
    %v255 = vmul.f32 %v254, %v254
    %v257 = vrot.slane %v255, 1
    %vm259 = vcmask 26624
    %v260 = vsel %vm259, %v257, 0.0
    %v261 = vrot.slane %v260, 4
    %v262 = vadd.f32 %v260, %v261
    %v263 = vrot.slane %v262, 2
    %v264 = vadd.f32 %v262, %v263
    %v265 = vrot.slane %v264, 1
    %v266 = vadd.f32 %v264, %v265
    %v267 = vmul.f32 %v266, 2.0
    %v268 = vadd.f32 %v250, %v267
    %v269 = vadd.f32 %v268, %v241
    %v271 = vrot.slane %v241, 3
    %v273 = vadd.f32 %v269, %v271
    %vm274 = vcmask 24576
    %v275 = vsel %vm274, %v273, 0.0
    %276 = vadd.xlane.f32.xlu0 %v275
    %v277 = vpop.xlane.xlu0 %276
    %v278 = vrot.slane %v277, 4
    %v279 = vadd.f32 %v277, %v278
    %v280 = vrot.slane %v279, 2
    %v281 = vadd.f32 %v279, %v280
    %v282 = vrot.slane %v281, 1
    %v283 = vadd.f32 %v281, %v282
    %s284 = vtos %v283
    %285 = vrot.lane.b32.xlu0 %v229, 1
    %v286 = vpop.permute.xlu0 %285
    %v288 = vsub.f32 %v229, %v286
    %v289 = vmul.f32 %v288, %v288
    %291 = vrot.lane.b32.xlu0 %v289, 127
    %v292 = vpop.permute.xlu0 %291
    %vm294 = vcmask 19456
    %v295 = vsel %vm294, %v292, 0.0
    %296 = vadd.xlane.f32.xlu0 %v295
    %v297 = vpop.xlane.xlu0 %296
    %v298 = vrot.slane %v297, 4
    %v299 = vadd.f32 %v297, %v298
    %v300 = vrot.slane %v299, 2
    %v301 = vadd.f32 %v299, %v300
    %v302 = vrot.slane %v301, 1
    %v303 = vadd.f32 %v301, %v302
    %s304 = vtos %v303
    %s305 = smul.f32 %s304, 2.0
    %s306 = sadd.f32 %s284, %s305
    %s307 = scalar_lea.smem [#allocation8], 0
    %308 = sst [smem:[%s307]] %s306
    %s309 = scalar_lea.vmem [#allocation3], 64
    %v310 = vld [vmem:[%s309] sm:$0xff]
    %v311 = vld [vmem:[%s309 + $0x8] sm:$0xff]
    %s312 = scalar_lea.vmem [#allocation6], 64
    %v313 = vld [vmem:[%s312] sm:$0xff]
    %v314 = vld [vmem:[%s312 + $0x8] sm:$0xff]
    %v315 = vsub.f32 %v310, %v313
    %v316 = vsub.f32 %v311, %v314
    %s317 = scalar_lea.vmem [#allocation3], 80
    %v318 = vld [vmem:[%s317] sm:$0xff]
    %v319 = vld [vmem:[%s317 + $0x8] sm:$0xff]
    %s320 = scalar_lea.vmem [#allocation6], 80
    %v321 = vld [vmem:[%s320] sm:$0xff]
    %v322 = vld [vmem:[%s320 + $0x8] sm:$0xff]
    %v323 = vsub.f32 %v318, %v321
    %v324 = vsub.f32 %v319, %v322
    %v325 = vadd.f32 %v315, %v323
    %v326 = vadd.f32 %v316, %v324
    %s327 = scalar_lea.vmem [#allocation3], 96
    %v328 = vld [vmem:[%s327] sm:$0xff]
    %v329 = vld [vmem:[%s327 + $0x8] sm:$0xff]
    %s330 = scalar_lea.vmem [#allocation6], 96
    %v331 = vld [vmem:[%s330] sm:$0xff]
    %v332 = vld [vmem:[%s330 + $0x8] sm:$0xff]
    %v333 = vsub.f32 %v328, %v331
    %v334 = vsub.f32 %v329, %v332
    %v335 = vadd.f32 %v325, %v333
    %v336 = vadd.f32 %v326, %v334
    %s337 = scalar_lea.vmem [#allocation3], 112
    %v338 = vld [vmem:[%s337] sm:$0xff]
    %v339 = vld [vmem:[%s337 + $0x8] sm:$0xff]
    %s340 = scalar_lea.vmem [#allocation6], 112
    %v341 = vld [vmem:[%s340] sm:$0xff]
    %v342 = vld [vmem:[%s340 + $0x8] sm:$0xff]
    %v343 = vsub.f32 %v338, %v341
    %v344 = vsub.f32 %v339, %v342
    %v345 = vadd.f32 %v335, %v343
    %v346 = vadd.f32 %v336, %v344
    %347 = vmatprep.subr.mxu0 0.0
    %348 = vmatpush1.msra.mxu0 %v345
    %349 = vmatprep.subr.mxu0 0.0
    %350 = vmatpush1.msra.mxu0 %v346
    %351 = vmatprep.subr.mxu0 0.0
    %352 = vmatpush1.msra.mxu0 0.0
    %353 = vmatprep.subr.mxu0 0.0
    %354 = vmatpush1.msra.mxu0 0.0
    %355 = vmatprep.subr.mxu0 0.0
    %356 = vmatpush1.msra.mxu0 0.0
    %357 = vmatprep.subr.mxu0 0.0
    %358 = vmatpush1.msra.mxu0 0.0
    %359 = vmatprep.subr.mxu0 0.0
    %360 = vmatpush1.msra.mxu0 0.0
    %361 = vmatprep.subr.mxu0 0.0
    %362 = vmatpush1.msra.mxu0 0.0
    %363 = vmatprep.subr.mxu0 0.0
    %364 = vmatpush1.msra.mxu0 0.0
    %365 = vmatprep.subr.mxu0 0.0
    %366 = vmatpush1.msra.mxu0 0.0
    %367 = vmatprep.subr.mxu0 0.0
    %368 = vmatpush1.msra.mxu0 0.0
    %369 = vmatprep.subr.mxu0 0.0
    %370 = vmatpush1.msra.mxu0 0.0
    %371 = vmatprep.subr.mxu0 0.0
    %372 = vmatpush1.msra.mxu0 0.0
    %373 = vmatprep.subr.mxu0 0.0
    %374 = vmatpush1.msra.mxu0 0.0
    %375 = vmatprep.subr.mxu0 0.0
    %376 = vmatpush1.msra.mxu0 0.0
    %377 = vmatprep.subr.mxu0 0.0
    %378 = vmatpush1.msra.mxu0 0.0
    %379 = vmatprep.subr.mxu0 0.0
    %380 = vmatpush1.msra.mxu0 0.0
    %381 = vmatprep.subr.mxu0 0.0
    %382 = vmatpush1.msra.mxu0 0.0
    %383 = vmatprep.subr.mxu0 0.0
    %384 = vmatpush1.msra.mxu0 0.0
    %385 = vmatprep.subr.mxu0 0.0
    %386 = vmatpush1.msra.mxu0 0.0
    %387 = vmatprep.subr.mxu0 0.0
    %388 = vmatpush1.msra.mxu0 0.0
    %389 = vmatprep.subr.mxu0 0.0
    %390 = vmatpush1.msra.mxu0 0.0
    %391 = vmatprep.subr.mxu0 0.0
    %392 = vmatpush1.msra.mxu0 0.0
    %393 = vmatprep.subr.mxu0 0.0
    %394 = vmatpush1.msra.mxu0 0.0
    %395 = vmatprep.subr.mxu0 0.0
    %396 = vmatpush1.msra.mxu0 0.0
    %397 = vmatprep.subr.mxu0 0.0
    %398 = vmatpush1.msra.mxu0 0.0
    %399 = vmatprep.subr.mxu0 0.0
    %400 = vmatpush1.msra.mxu0 0.0
    %401 = vmatprep.subr.mxu0 0.0
    %402 = vmatpush1.msra.mxu0 0.0
    %403 = vmatprep.subr.mxu0 0.0
    %404 = vmatpush1.msra.mxu0 0.0
    %405 = vmatprep.subr.mxu0 0.0
    %406 = vmatpush1.msra.mxu0 0.0
    %407 = vmatprep.subr.mxu0 0.0
    %408 = vmatpush1.msra.mxu0 0.0
    %409 = vmatprep.subr.mxu0 0.0
    %410 = vmatpush1.msra.mxu0 0.0
    %411 = vmatprep.mubr.f32.mxu0 0.0
    %412 = vmatmul.mubr.f32.gmra.mrb[0].mxu0 %v87
    %v413 = vpop.f32.mrb[0].mxu0
    %v414 = vadd.f32 0.0, %v413
    %v415 = vpop.f32.mrb[0].mxu0
    %416 = vdwg.mxu0
    %v418 = vsel %vm85, %v414, 0
    %420 = vmatprep.subr.mxu0 0.0
    %421 = vmatpush1.msra.mxu0 %v47
    %422 = vmatprep.subr.mxu0 0.0
    %423 = vmatpush1.msra.mxu0 %v48
    %424 = vmatprep.subr.mxu0 0.0
    %425 = vmatpush1.msra.mxu0 0.0
    %426 = vmatprep.subr.mxu0 0.0
    %427 = vmatpush1.msra.mxu0 0.0
    %428 = vmatprep.subr.mxu0 0.0
    %429 = vmatpush1.msra.mxu0 0.0
    %430 = vmatprep.subr.mxu0 0.0
    %431 = vmatpush1.msra.mxu0 0.0
    %432 = vmatprep.subr.mxu0 0.0
    %433 = vmatpush1.msra.mxu0 0.0
    %434 = vmatprep.subr.mxu0 0.0
    %435 = vmatpush1.msra.mxu0 0.0
    %436 = vmatprep.subr.mxu0 0.0
    %437 = vmatpush1.msra.mxu0 0.0
    %438 = vmatprep.subr.mxu0 0.0
    %439 = vmatpush1.msra.mxu0 0.0
    %440 = vmatprep.subr.mxu0 0.0
    %441 = vmatpush1.msra.mxu0 0.0
    %442 = vmatprep.subr.mxu0 0.0
    %443 = vmatpush1.msra.mxu0 0.0
    %444 = vmatprep.subr.mxu0 0.0
    %445 = vmatpush1.msra.mxu0 0.0
    %446 = vmatprep.subr.mxu0 0.0
    %447 = vmatpush1.msra.mxu0 0.0
    %448 = vmatprep.subr.mxu0 0.0
    %449 = vmatpush1.msra.mxu0 0.0
    %450 = vmatprep.subr.mxu0 0.0
    %451 = vmatpush1.msra.mxu0 0.0
    %452 = vmatprep.subr.mxu0 0.0
    %453 = vmatpush1.msra.mxu0 0.0
    %454 = vmatprep.subr.mxu0 0.0
    %455 = vmatpush1.msra.mxu0 0.0
    %456 = vmatprep.subr.mxu0 0.0
    %457 = vmatpush1.msra.mxu0 0.0
    %458 = vmatprep.subr.mxu0 0.0
    %459 = vmatpush1.msra.mxu0 0.0
    %460 = vmatprep.subr.mxu0 0.0
    %461 = vmatpush1.msra.mxu0 0.0
    %462 = vmatprep.subr.mxu0 0.0
    %463 = vmatpush1.msra.mxu0 0.0
    %464 = vmatprep.subr.mxu0 0.0
    %465 = vmatpush1.msra.mxu0 0.0
    %466 = vmatprep.subr.mxu0 0.0
    %467 = vmatpush1.msra.mxu0 0.0
    %468 = vmatprep.subr.mxu0 0.0
    %469 = vmatpush1.msra.mxu0 0.0
    %470 = vmatprep.subr.mxu0 0.0
    %471 = vmatpush1.msra.mxu0 0.0
    %472 = vmatprep.subr.mxu0 0.0
    %473 = vmatpush1.msra.mxu0 0.0
    %474 = vmatprep.subr.mxu0 0.0
    %475 = vmatpush1.msra.mxu0 0.0
    %476 = vmatprep.subr.mxu0 0.0
    %477 = vmatpush1.msra.mxu0 0.0
    %478 = vmatprep.subr.mxu0 0.0
    %479 = vmatpush1.msra.mxu0 0.0
    %480 = vmatprep.subr.mxu0 0.0
    %481 = vmatpush1.msra.mxu0 0.0
    %482 = vmatprep.subr.mxu0 0.0
    %483 = vmatpush1.msra.mxu0 0.0
    %484 = vmatprep.mubr.f32.mxu0 0.0
    %485 = vmatmul.mubr.f32.gmra.mrb[0].mxu0 %v418
    %v486 = vpop.f32.mrb[0].mxu0
    %v487 = vadd.f32 0.0, %v486
    %v488 = vpop.f32.mrb[0].mxu0
    %489 = vdwg.mxu0
    %v490 = vmul.f32 %v487, %v487
    %v491 = vmul.f32 %v490, %v240
    %v492 = vsel %vm243, %v491, 0.0
    %v493 = vrot.slane %v492, 4
    %v494 = vadd.f32 %v492, %v493
    %v495 = vrot.slane %v494, 2
    %v496 = vadd.f32 %v494, %v495
    %v497 = vrot.slane %v496, 1
    %v498 = vadd.f32 %v496, %v497
    %v500 = vrot.slane %v487, 7
    %v502 = vsub.f32 %v487, %v500
    %v503 = vmul.f32 %v502, %v502
    %v505 = vrot.slane %v503, 1
    %v507 = vsel %vm259, %v505, 0.0
    %v508 = vrot.slane %v507, 4
    %v509 = vadd.f32 %v507, %v508
    %v510 = vrot.slane %v509, 2
    %v511 = vadd.f32 %v509, %v510
    %v512 = vrot.slane %v511, 1
    %v513 = vadd.f32 %v511, %v512
    %v514 = vmul.f32 %v513, 2.0
    %v515 = vadd.f32 %v498, %v514
    %v516 = vadd.f32 %v515, %v490
    %v518 = vrot.slane %v490, 3
    %v520 = vadd.f32 %v516, %v518
    %v521 = vsel %vm274, %v520, 0.0
    %522 = vadd.xlane.f32.xlu0 %v521
    %v523 = vpop.xlane.xlu0 %522
    %v524 = vrot.slane %v523, 4
    %v525 = vadd.f32 %v523, %v524
    %v526 = vrot.slane %v525, 2
    %v527 = vadd.f32 %v525, %v526
    %v528 = vrot.slane %v527, 1
    %v529 = vadd.f32 %v527, %v528
    %s530 = vtos %v529
    %531 = vrot.lane.b32.xlu0 %v487, 1
    %v532 = vpop.permute.xlu0 %531
    %v534 = vsub.f32 %v487, %v532
    %v535 = vmul.f32 %v534, %v534
    %537 = vrot.lane.b32.xlu0 %v535, 127
    %v538 = vpop.permute.xlu0 %537
    %v540 = vsel %vm294, %v538, 0.0
    %541 = vadd.xlane.f32.xlu0 %v540
    %v542 = vpop.xlane.xlu0 %541
    %v543 = vrot.slane %v542, 4
    %v544 = vadd.f32 %v542, %v543
    %v545 = vrot.slane %v544, 2
    %v546 = vadd.f32 %v544, %v545
    %v547 = vrot.slane %v546, 1
    %v548 = vadd.f32 %v546, %v547
    %s549 = vtos %v548
    %s550 = smul.f32 %s549, 2.0
    %s551 = sadd.f32 %s530, %s550
    %s552 = scalar_lea.smem [#allocation8], 128
    %553 = sst [smem:[%s552]] %s551
    // Predicated region
    $region26: #{tpu_custom_call.1} parent=1 // pred_check
      _
    $region27: #{tpu_custom_call.1} parent=1 // pred_check_branch
      %555 = sbr.rel (0) target = $region29
    $region28: #{tpu_custom_call.1} parent=1 // pred_region
      %s557 = ssub.s32 32, 32
      %558 = vsyncadd [#allocation5], %s557
      %s560 = sshll.u32 %s4, 4
      %s561 = int_to_ptr.vmem [resolvable:$true] %s560
      %563 = dma.smem_to_vmem [#allocation8], 32, %s561, [#allocation5]
    $region29: #{tpu_custom_call.1} parent=1 // pred_fallthru
      _
    // Predicated region
    $region30: #{tpu_custom_call.1} parent=1 // pred_check
      _
    $region31: #{tpu_custom_call.1} parent=1 // pred_check_branch
      %565 = sbr.rel (0) target = $region33
    $region32: #{tpu_custom_call.1} parent=1 // pred_region
      %566 = dma.done [#allocation5], 32
    $region33: #{tpu_custom_call.1} parent=1 // pred_fallthru
      _
    %567 = sfence
    %568 = vsyncpa [#allocation4], 1
    %569 = vsyncpa [#allocation7], 1
    %570 = vsyncpa [#allocation5], 1

</llo_original>
